<compile_context>
chip_gen: v5e
topology: v5e:2x2
jax: 0.10.0
libtpu: 0.0.40
codegen_flags: <defaults>
</compile_context>

<pallas_src>
import functools

import jax
import jax.numpy as jnp
from jax.experimental import pallas as pl
from jax.experimental.pallas import tpu as pltpu

# Tile preferences (lane multiples of 128; sublane multiples of 16 for bf16).
_TM_PREF = 256
_TN_PREF = 512
_TK_PREF = 512
_HEAD_TN_PREF = 1024   # <=1024 keeps double-buffered head weight tiles inside v7x's VMEM budget
# Fits inside v5e (128 MiB), v6e (128 MiB) and v7x (64 MiB) physical VMEM with headroom.
_VMEM_LIMIT = 48 * 1024 * 1024


def _round_up(x, m):
    return (x + m - 1) // m * m


def _tile_and_pad(dim, pref, align):
    """Return (tile, padded_dim): tile is the largest multiple of `align` <= pref
    that divides round_up(dim, align). Padding is only to `align`, never to the tile,
    so no wasted MXU FLOPs / DMA beyond lane/sublane alignment."""
    d = _round_up(dim, align)
    if d <= pref:
        return d, d
    best = align
    t = align
    while t <= pref:
        if d % t == 0:
            best = t
        t += align
    return best, d


def _pad2(x, rows, cols):
    r, c = x.shape
    if r == rows and c == cols:
        return x
    return jnp.pad(x, ((0, rows - r), (0, cols - c)))


# ----------------------------------------------------------------------------
# Tiled dense (x @ w + b [+ gelu]) kernel
# ----------------------------------------------------------------------------
def _dense_kernel(x_ref, w_ref, b_ref, o_ref, acc_ref, *, activation):
    k = pl.program_id(2)

    @pl.when(k == 0)
    def _init():
        acc_ref[...] = jnp.zeros_like(acc_ref)

    acc_ref[...] += jnp.dot(x_ref[...], w_ref[...], preferred_element_type=jnp.float32)

    @pl.when(k == pl.num_programs(2) - 1)
    def _finalize():
        out = acc_ref[...] + b_ref[...]
        if activation == "gelu":
            # TODO(synk): exact erf-GELU; tanh approximation used for guaranteed Mosaic lowering.
            out = 0.5 * out * (1.0 + jnp.tanh(0.7978845608028654 * (out + 0.044715 * out * out * out)))
        o_ref[...] = out.astype(o_ref.dtype)


def dense(x, w, b, *, activation=None, out_dtype=jnp.bfloat16):
    """(M, K) @ (K, N) + (N,) -> (M, N), tiled+pipelined, bf16 operands, fp32 accumulation."""
    M, K = x.shape
    K2, N = w.shape
    assert K == K2
    tm, Mp = _tile_and_pad(M, _TM_PREF, 16)
    tk, Kp = _tile_and_pad(K, _TK_PREF, 128)
    tn, Np = _tile_and_pad(N, _TN_PREF, 128)

    xp = _pad2(x.astype(jnp.bfloat16), Mp, Kp)
    wp = _pad2(w.astype(jnp.bfloat16), Kp, Np)   # no-op cast: weights pre-stored bf16
    bp = _pad2(b.reshape(1, N).astype(jnp.float32), 1, Np)

    grid = (Mp // tm, Np // tn, Kp // tk)
    out = pl.pallas_call(
        functools.partial(_dense_kernel, activation=activation),
        out_shape=jax.ShapeDtypeStruct((Mp, Np), out_dtype),
        grid_spec=pltpu.PrefetchScalarGridSpec(
            num_scalar_prefetch=0,
            grid=grid,
            in_specs=[
                pl.BlockSpec((tm, tk), lambda i, j, k: (i, k)),
                pl.BlockSpec((tk, tn), lambda i, j, k: (k, j)),
                pl.BlockSpec((1, tn), lambda i, j, k: (0, j)),
            ],
            out_specs=pl.BlockSpec((tm, tn), lambda i, j, k: (i, j)),
            scratch_shapes=[pltpu.VMEM((tm, tn), jnp.float32)],
        ),
        compiler_params=pltpu.CompilerParams(
            dimension_semantics=("parallel", "parallel", "arbitrary"),
            vmem_limit_bytes=_VMEM_LIMIT,
        ),
    )(xp, wp, bp)
    return out[:M, :N]


# ----------------------------------------------------------------------------
# Fused dense + bias + residual-add + LayerNorm kernel (full hidden dim per block)
# ----------------------------------------------------------------------------
def _dense_res_ln_kernel(x_ref, w_ref, b_ref, r_ref, g_ref, bt_ref, o_ref, acc_ref, *, eps):
    k = pl.program_id(1)

    @pl.when(k == 0)
    def _init():
        acc_ref[...] = jnp.zeros_like(acc_ref)

    acc_ref[...] += jnp.dot(x_ref[...], w_ref[...], preferred_element_type=jnp.float32)

    @pl.when(k == pl.num_programs(1) - 1)
    def _finalize():
        y = acc_ref[...] + b_ref[...] + r_ref[...].astype(jnp.float32)
        mu = jnp.mean(y, axis=-1, keepdims=True)
        var = jnp.mean((y - mu) ** 2, axis=-1, keepdims=True)
        o_ref[...] = ((y - mu) * jax.lax.rsqrt(var + eps) * g_ref[...] + bt_ref[...]).astype(o_ref.dtype)


def dense_res_ln(x, w, b, residual, gamma, beta, *, eps=1e-12):
    """LayerNorm(residual + x @ w + b) with the norm fused in-kernel (N = full hidden dim)."""
    M, K = x.shape
    K2, N = w.shape
    assert K == K2 and residual.shape == (M, N)
    if N % 128 != 0:
        # TODO(synk): fused LN needs the full feature dim lane-aligned in one block.
        return layer_norm(residual + dense(x, w, b), gamma, beta)

    tm, Mp = _tile_and_pad(M, _TM_PREF, 16)
    tk, Kp = _tile_and_pad(K, _TK_PREF, 128)

    xp = _pad2(x.astype(jnp.bfloat16), Mp, Kp)
    wp = _pad2(w.astype(jnp.bfloat16), Kp, N)
    bp = b.reshape(1, N).astype(jnp.float32)
    rp = _pad2(residual.astype(jnp.bfloat16), Mp, N)
    gp = gamma.reshape(1, N).astype(jnp.float32)
    btp = beta.reshape(1, N).astype(jnp.float32)

    grid = (Mp // tm, Kp // tk)
    out = pl.pallas_call(
        functools.partial(_dense_res_ln_kernel, eps=eps),
        out_shape=jax.ShapeDtypeStruct((Mp, N), jnp.bfloat16),
        grid_spec=pltpu.PrefetchScalarGridSpec(
            num_scalar_prefetch=0,
            grid=grid,
            in_specs=[
                pl.BlockSpec((tm, tk), lambda i, k: (i, k)),
                pl.BlockSpec((tk, N), lambda i, k: (k, 0)),
                pl.BlockSpec((1, N), lambda i, k: (0, 0)),
                pl.BlockSpec((tm, N), lambda i, k: (i, 0)),
                pl.BlockSpec((1, N), lambda i, k: (0, 0)),
                pl.BlockSpec((1, N), lambda i, k: (0, 0)),
            ],
            out_specs=pl.BlockSpec((tm, N), lambda i, k: (i, 0)),
            scratch_shapes=[pltpu.VMEM((tm, N), jnp.float32)],
        ),
        compiler_params=pltpu.CompilerParams(
            dimension_semantics=("parallel", "arbitrary"),
            vmem_limit_bytes=_VMEM_LIMIT,
        ),
    )(xp, wp, bp, rp, gp, btp)
    return out[:M]


# ----------------------------------------------------------------------------
# Classifier head: full-K contraction + fused BCE-with-logits loss (per-tile partials)
# ----------------------------------------------------------------------------
def _head_loss_kernel(x_ref, w_ref, b_ref, y_ref, o_ref, loss_ref,
                      *, mask_rows, mask_cols, m_valid, n_valid):
    logits = jnp.dot(x_ref[...], w_ref[...], preferred_element_type=jnp.float32) + b_ref[...]
    o_ref[...] = logits.astype(o_ref.dtype)

    # Numerically-stable BCE-with-logits (mean reduction applied host-side).
    # TODO(synk): jnp.log1p variant is marginally more accurate at large |logit|;
    # log(1+exp) kept for guaranteed Mosaic lowering.
    y = y_ref[...].astype(jnp.float32)
    per = jnp.maximum(logits, 0.0) - logits * y + jnp.log(1.0 + jnp.exp(-jnp.abs(logits)))

    tm, tn = per.shape
    if mask_rows:  # specialized away when M is tile-exact
        rows = pl.program_id(0) * tm + jax.lax.broadcasted_iota(jnp.int32, (tm, tn), 0)
        per = jnp.where(rows < m_valid, per, 0.0)
    if mask_cols:  # specialized away when N is tile-exact
        cols = pl.program_id(1) * tn + jax.lax.broadcasted_iota(jnp.int32, (tm, tn), 1)
        per = jnp.where(cols < n_valid, per, 0.0)

    # Per-tile partial sum -> lets both grid axes be "parallel" (v7x megacore) instead of a
    # single resident (1,1) accumulator. Written to an (8,128)-aligned slot; host sums slots.
    tile_loss = jnp.sum(per)
    sl = jax.lax.broadcasted_iota(jnp.int32, (8, 128), 0)
    ln = jax.lax.broadcasted_iota(jnp.int32, (8, 128), 1)
    loss_ref[...] = jnp.where((sl == 0) & (ln == 0), tile_loss, 0.0)


def lightxml_head(feats, w_l0, b_l0, labels=None):
    """feats: (B, feature_layers*H); w_l0: (feature_layers*H, n_labels) stored bf16."""
    if labels is None:
        # bf16 logits halve the (B, n_labels) HBM writeback; top-k selection tolerates it.
        return dense(feats, w_l0, b_l0, out_dtype=jnp.bfloat16)

    M, K = feats.shape
    _, N = w_l0.shape
    tm, Mp = _tile_and_pad(M, _TM_PREF, 16)
    Kp = _round_up(K, 128)                      # full-K contraction: no k grid axis
    tn, Np = _tile_and_pad(N, _HEAD_TN_PREF, 128)

    xp = _pad2(feats.astype(jnp.bfloat16), Mp, Kp)
    wp = _pad2(w_l0.astype(jnp.bfloat16), Kp, Np)      # no-op cast (pre-stored bf16)
    bp = _pad2(b_l0.reshape(1, N).astype(jnp.float32), 1, Np)
    yp = _pad2(labels.astype(jnp.bfloat16), Mp, Np)    # bf16 labels: half the y-stream of f32

    gm, gn = Mp // tm, Np // tn
    mask_rows = Mp != M
    mask_cols = Np != N
    # TODO(synk): add pipeline_mode=pl.Buffered(3) on the streamed w spec if profiling
    # still shows exposed DMA; int8 w_l0 (dequant in epilogue) is a further v5e/v6e win.
    logits_p, loss_tiles = pl.pallas_call(
        functools.partial(_head_loss_kernel, mask_rows=mask_rows, mask_cols=mask_cols,
                          m_valid=M, n_valid=N),
        out_shape=(jax.ShapeDtypeStruct((Mp, Np), jnp.bfloat16),
                   jax.ShapeDtypeStruct((gm * 8, gn * 128), jnp.float32)),
        grid_spec=pltpu.PrefetchScalarGridSpec(
            num_scalar_prefetch=0,
            grid=(gm, gn),
            in_specs=[
                pl.BlockSpec((tm, Kp), lambda i, j: (i, 0)),
                pl.BlockSpec((Kp, tn), lambda i, j: (0, j)),
                pl.BlockSpec((1, tn), lambda i, j: (0, j)),
                pl.BlockSpec((tm, tn), lambda i, j: (i, j)),
            ],
            out_specs=(pl.BlockSpec((tm, tn), lambda i, j: (i, j)),
                       pl.BlockSpec((8, 128), lambda i, j: (i, j))),
        ),
        compiler_params=pltpu.CompilerParams(
            dimension_semantics=("parallel", "parallel"),
            vmem_limit_bytes=_VMEM_LIMIT,
        ),
    )(xp, wp, bp, yp)

    logits = logits_p[:M, :N]
    loss = jnp.sum(loss_tiles) / jnp.float32(M * N)   # mean reduction (torch default)
    return logits, loss


# ----------------------------------------------------------------------------
# BERT-style encoder glue (softmax / embedding-LN in plain JAX; matmuls via Pallas)
# ----------------------------------------------------------------------------
def layer_norm(x, g, b, eps=1e-12):
    xf = x.astype(jnp.float32)
    mu = jnp.mean(xf, axis=-1, keepdims=True)
    var = jnp.mean((xf - mu) ** 2, axis=-1, keepdims=True)
    y = (xf - mu) * jax.lax.rsqrt(var + eps) * g + b
    return y.astype(jnp.bfloat16)


def bert_layer(h, mask_bias, p, n_heads):
    B, S, H = h.shape
    dh = H // n_heads
    x2 = h.reshape(B * S, H)

    # Fused Q/K/V projection: single (H, 3H) matmul; contiguous column splits (no strided gather).
    qkv = dense(x2, p["w_qkv"], p["b_qkv"])                     # (B*S, 3H) bf16
    q = qkv[:, :H].reshape(B, S, n_heads, dh).transpose(0, 2, 1, 3)
    k = qkv[:, H:2 * H].reshape(B, S, n_heads, dh).transpose(0, 2, 1, 3)
    v = qkv[:, 2 * H:].reshape(B, S, n_heads, dh).transpose(0, 2, 1, 3)

    # bf16 operands + f32 MXU accumulation (single-pass MXU).
    # TODO(synk): replace with a fused flash-attention Pallas kernel for S >= 256.
    scores = jnp.einsum("bhqd,bhkd->bhqk", q, k, preferred_element_type=jnp.float32)
    scores = scores * (1.0 / jnp.sqrt(jnp.float32(dh))) + mask_bias
    probs = jax.nn.softmax(scores, axis=-1).astype(jnp.bfloat16)
    ctx = jnp.einsum("bhqk,bhkd->bhqd", probs, v)
    ctx = ctx.transpose(0, 2, 1, 3).reshape(B * S, H).astype(jnp.bfloat16)

    # Attention output projection with fused bias + residual + LayerNorm.
    h1 = dense_res_ln(ctx, p["wo"], p["bo"], x2, p["ln1_g"], p["ln1_b"])

    # FFN: GELU fused into up-projection; bias + residual + LayerNorm fused into down-projection.
    ff = dense(h1, p["wi"], p["bi"], activation="gelu")
    h2 = dense_res_ln(ff, p["wo2"], p["bo2"], h1, p["ln2_g"], p["ln2_b"])
    return h2.reshape(B, S, H)


def bert_forward(params, input_ids, attention_mask, token_type_ids):
    B, S = input_ids.shape
    pos = jnp.arange(S)
    h = (
        params["word_emb"][input_ids]
        + params["pos_emb"][pos][None, :, :]
        + params["type_emb"][token_type_ids]
    )
    h = layer_norm(h, params["emb_ln_g"], params["emb_ln_b"])
    hidden_states = [h]
    mask_bias = (1.0 - attention_mask.astype(jnp.float32))[:, None, None, :] * -10000.0
    for lp in params["layers"]:
        h = bert_layer(h, mask_bias, lp, params["n_heads"])
        hidden_states.append(h)
    return hidden_states  # equivalent of outputs[-1] with output_hidden_states=True


def lightxml_forward(params, input_ids, attention_mask, token_type_ids,
                     labels=None, feature_layers=5):
    hs = bert_forward(params["bert"], input_ids, attention_mask, token_type_ids)
    # out = torch.cat([outs[-i][:, 0] for i in range(1, feature_layers + 1)], dim=-1)
    feats = jnp.concatenate([hs[-i][:, 0, :] for i in range(1, feature_layers + 1)], axis=-1)
    # dropout -> identity (eval semantics)
    if labels is not None:
        return lightxml_head(feats, params["w_l0"], params["b_l0"], labels=labels)
    return lightxml_head(feats, params["w_l0"], params["b_l0"])


# ----------------------------------------------------------------------------
# Deterministic parameter construction (weights / embeddings pre-cast to bf16 once)
# ----------------------------------------------------------------------------
def init_params(key, *, vocab, max_pos, type_vocab, hidden, n_layers, n_heads,
                intermediate, feature_layers, n_labels):
    def nrm(k, shape):
        return (0.02 * jax.random.normal(k, shape, dtype=jnp.float32)).astype(jnp.bfloat16)

    keys = jax.random.split(key, 4 + n_layers)
    bert = {
        "word_emb": nrm(keys[0], (vocab, hidden)),
        "pos_emb": nrm(keys[1], (max_pos, hidden)),
        "type_emb": nrm(keys[2], (type_vocab, hidden)),
        "emb_ln_g": jnp.ones((hidden,), jnp.float32),
        "emb_ln_b": jnp.zeros((hidden,), jnp.float32),
        "n_heads": n_heads,
        "layers": [],
    }
    for li in range(n_layers):
        lk = jax.random.split(keys[3 + li], 6)
        wq, wk, wv = nrm(lk[0], (hidden, hidden)), nrm(lk[1], (hidden, hidden)), nrm(lk[2], (hidden, hidden))
        bert["layers"].append({
            # packed QKV: columns [0:H]=Q, [H:2H]=K, [2H:3H]=V (bf16)
            "w_qkv": jnp.concatenate([wq, wk, wv], axis=1),
            "b_qkv": jnp.zeros((3 * hidden,), jnp.float32),
            "wo": nrm(lk[3], (hidden, hidden)), "bo": jnp.zeros((hidden,), jnp.float32),
            "ln1_g": jnp.ones((hidden,), jnp.float32), "ln1_b": jnp.zeros((hidden,), jnp.float32),
            "wi": nrm(lk[4], (hidden, intermediate)), "bi": jnp.zeros((intermediate,), jnp.float32),
            "wo2": nrm(lk[5], (intermediate, hidden)), "bo2": jnp.zeros((hidden,), jnp.float32),
            "ln2_g": jnp.ones((hidden,), jnp.float32), "ln2_b": jnp.zeros((hidden,), jnp.float32),
        })
    head_key = jax.random.split(keys[-1], 2)
    params = {
        "bert": bert,
        # l0: Linear(feature_layers * hidden, n_labels); stored as (in, out), bf16
        "w_l0": nrm(head_key[0], (feature_layers * hidden, n_labels)),
        "b_l0": jnp.zeros((n_labels,), jnp.float32),
    }
    return params


if __name__ == "__main__":
    # Small but lane/sublane-aligned demo shapes.
    B, S = 2, 16
    HIDDEN, N_HEADS, N_LAYERS, INTERMEDIATE = 128, 4, 5, 256
    VOCAB, MAX_POS, TYPE_VOCAB = 128, 32, 2
    FEATURE_LAYERS, N_LABELS = 5, 256

    key = jax.random.PRNGKey(0)
    k_param, k_ids, k_lab = jax.random.split(key, 3)

    params = init_params(
        k_param, vocab=VOCAB, max_pos=MAX_POS, type_vocab=TYPE_VOCAB,
        hidden=HIDDEN, n_layers=N_LAYERS, n_heads=N_HEADS,
        intermediate=INTERMEDIATE, feature_layers=FEATURE_LAYERS, n_labels=N_LABELS,
    )

    input_ids = jax.random.randint(k_ids, (B, S), 0, VOCAB, dtype=jnp.int32)
    attention_mask = jnp.ones((B, S), dtype=jnp.int32).at[1, S - 4:].set(0)
    token_type_ids = jnp.zeros((B, S), dtype=jnp.int32)
    labels = (jax.random.uniform(k_lab, (B, N_LABELS)) > 0.9).astype(jnp.float32)

    # Training-mode path (logits + fused BCE loss).
    logits, loss = lightxml_forward(
        params, input_ids, attention_mask, token_type_ids,
        labels=labels, feature_layers=FEATURE_LAYERS,
    )
    jax.block_until_ready((logits, loss))
    assert logits.shape == (B, N_LABELS)
    assert loss.shape == ()
    assert bool(jnp.isfinite(loss))

    # Inference path (logits only).
    logits_eval = lightxml_forward(
        params, input_ids, attention_mask, token_type_ids,
        labels=None, feature_layers=FEATURE_LAYERS,
    )
    jax.block_until_ready(logits_eval)
    assert logits_eval.shape == (B, N_LABELS)

    print("KERNEL_OK")
</pallas_src>

<mosaic_0001>
module attributes {stable_mosaic.version = 11 : i64} {
  func.func @_dense_kernel(%arg0: i32, %arg1: i32, %arg2: i32, %arg3: memref<32x128xbf16, #tpu.memory_space<vmem>>, %arg4: memref<128x384xbf16, #tpu.memory_space<vmem>>, %arg5: memref<1x384xf32, #tpu.memory_space<vmem>>, %arg6: memref<32x384xbf16, #tpu.memory_space<vmem>>, %arg7: memref<32x384xf32, #tpu.memory_space<vmem>>) attributes {dimension_semantics = [#tpu.dimension_semantics<parallel>, #tpu.dimension_semantics<parallel>, #tpu.dimension_semantics<arbitrary>], iteration_bounds = array<i64: 1, 1, 1>, scalar_prefetch = 0 : i64, scratch_operands = 1 : i64, tpu.core_type = #tpu.core_type<tc>, window_params = [{transform_indices = @transform_0, window_bounds = array<i64: 32, 128>}, {transform_indices = @transform_1, window_bounds = array<i64: 128, 384>}, {transform_indices = @transform_2, window_bounds = array<i64: 1, 384>}, {transform_indices = @transform_3, window_bounds = array<i64: 32, 384>}]} {
    %c0_i32 = arith.constant 0 : i32
    %0 = arith.cmpi eq, %arg2, %c0_i32 : i32
    %1 = arith.extui %0 : i1 to i32
    %c0_i32_0 = arith.constant 0 : i32
    %2 = arith.cmpi ne, %1, %c0_i32_0 : i32
    scf.if %2 {
      %cst_10 = arith.constant 0.000000e+00 : f32
      %12 = vector.broadcast %cst_10 : f32 to vector<32x384xf32>
      %c0_11 = arith.constant 0 : index
      %c0_12 = arith.constant 0 : index
      %13 = vector.load %arg7[%c0_11, %c0_12] : memref<32x384xf32, #tpu.memory_space<vmem>>, vector<32x384xf32>
      tpu.vector_store %arg7[%c0_11, %c0_12], %12 {strides = array<i32>} : memref<32x384xf32, #tpu.memory_space<vmem>>, vector<32x384xf32>,
    } else {
    }
    %c0 = arith.constant 0 : index
    %c0_1 = arith.constant 0 : index
    %3 = vector.load %arg7[%c0, %c0_1] : memref<32x384xf32, #tpu.memory_space<vmem>>, vector<32x384xf32>
    %c0_2 = arith.constant 0 : index
    %c0_3 = arith.constant 0 : index
    %4 = vector.load %arg3[%c0_2, %c0_3] : memref<32x128xbf16, #tpu.memory_space<vmem>>, vector<32x128xbf16>
    %c0_4 = arith.constant 0 : index
    %c0_5 = arith.constant 0 : index
    %5 = vector.load %arg4[%c0_4, %c0_5] : memref<128x384xbf16, #tpu.memory_space<vmem>>, vector<128x384xbf16>
    %cst = arith.constant dense<0.000000e+00> : vector<32x384xf32>
    %6 = tpu.matmul %4, %5, %cst {dimension_numbers = #tpu.dot_dimension_numbers<[1], [0], [0], [1], [0, 0, 1, 1], [], []>} : vector<32x128xbf16>, vector<128x384xbf16>, vector<32x384xf32> -> vector<32x384xf32>
    %7 = arith.addf %3, %6 : vector<32x384xf32>
    %c0_6 = arith.constant 0 : index
    %c0_7 = arith.constant 0 : index
    %8 = vector.load %arg7[%c0_6, %c0_7] : memref<32x384xf32, #tpu.memory_space<vmem>>, vector<32x384xf32>
    tpu.vector_store %arg7[%c0_6, %c0_7], %7 {strides = array<i32>} : memref<32x384xf32, #tpu.memory_space<vmem>>, vector<32x384xf32>,
    %c0_i32_8 = arith.constant 0 : i32
    %9 = arith.cmpi eq, %arg2, %c0_i32_8 : i32
    %10 = arith.extui %9 : i1 to i32
    %c0_i32_9 = arith.constant 0 : i32
    %11 = arith.cmpi ne, %10, %c0_i32_9 : i32
    scf.if %11 {
      %c0_10 = arith.constant 0 : index
      %c0_11 = arith.constant 0 : index
      %12 = vector.load %arg7[%c0_10, %c0_11] : memref<32x384xf32, #tpu.memory_space<vmem>>, vector<32x384xf32>
      %c0_12 = arith.constant 0 : index
      %c0_13 = arith.constant 0 : index
      %13 = vector.load %arg5[%c0_12, %c0_13] : memref<1x384xf32, #tpu.memory_space<vmem>>, vector<1x384xf32>
      %14 = vector.broadcast %13 : vector<1x384xf32> to vector<32x384xf32>
      %15 = arith.addf %12, %14 : vector<32x384xf32>
      %16 = arith.truncf %15 : vector<32x384xf32> to vector<32x384xbf16>
      %c0_14 = arith.constant 0 : index
      %c0_15 = arith.constant 0 : index
      %17 = vector.load %arg6[%c0_14, %c0_15] : memref<32x384xbf16, #tpu.memory_space<vmem>>, vector<32x384xbf16>
      tpu.vector_store %arg6[%c0_14, %c0_15], %16 {strides = array<i32>} : memref<32x384xbf16, #tpu.memory_space<vmem>>, vector<32x384xbf16>,
    } else {
    }
    return
  }
  func.func @transform_0(%arg0: i32, %arg1: i32, %arg2: i32) -> (i32, i32) {
    %c0_i32 = arith.constant 0 : i32
    return %arg0, %arg2 : i32, i32
  }
  func.func @transform_1(%arg0: i32, %arg1: i32, %arg2: i32) -> (i32, i32) {
    %c0_i32 = arith.constant 0 : i32
    return %arg2, %arg1 : i32, i32
  }
  func.func @transform_2(%arg0: i32, %arg1: i32, %arg2: i32) -> (i32, i32) {
    %c0_i32 = arith.constant 0 : i32
    %c0_i32_0 = arith.constant 0 : i32
    return %c0_i32, %arg1 : i32, i32
  }
  func.func @transform_3(%arg0: i32, %arg1: i32, %arg2: i32) -> (i32, i32) {
    %c0_i32 = arith.constant 0 : i32
    return %arg0, %arg1 : i32, i32
  }
}

</mosaic_0001>

<llo_original>
// kernel: tpu_custom_call.1
$region0: #{tpu_custom_call.1}
  #allocation0 [shape = 'u32[]', space=smem, size = 0x4, offset = 0x4, fixed_abs, tag = 'smem constant byte address 0x4 - core index']
  #allocation1 [shape = 'u32[72,128]{1,0:T(1,128)}', space=vmem, size = 0x9000, scoped, tag = 'internal scratch']
  #allocation2 [shape = 'f32[32,384]{1,0:T(8,128)}', space=vmem, size = 0xc000, scoped, tag = 'scratch operand']
  %s0 = inlined_call_operand.hbm [shape: bf16[32,128], index: 0, kind: input, shape index: {}]
  %s1 = inlined_call_operand.hbm [shape: bf16[128,384], index: 1, kind: input, shape index: {}]
  %s2 = inlined_call_operand.hbm [shape: f32[1,384], index: 2, kind: input, shape index: {}]
  %s3 = inlined_call_operand.hbm [shape: bf16[32,384], index: 3, kind: output, shape index: {}]
  %s4 = sld [smem:[#allocation0]]
  $region42: #{tpu_custom_call.1} parent=0
    _
  %s6 = ssub.s32 1, %s4
  %s7 = scalar_select 0, %s6, %s4
  $region1: #{tpu_custom_call.1} parent=0
    #allocation3 [shape = 'u8[8192]{0}', space=vmem, size = 0x2000, scoped, tag = 'input window, operand 0, single buffered']
    #allocation4 [shape = 's32[1]{0}', space=sflag, size = 0x4, scoped, tag = 'scoped memory for tpu_custom_call.1']
    #allocation5 [shape = 's32[1]{0}', space=sflag, size = 0x4, scoped, tag = 'scoped memory for tpu_custom_call.1']
    #allocation6 [shape = 'u8[98304]{0}', space=vmem, size = 0x18000, scoped, tag = 'input window, operand 1, single buffered']
    #allocation7 [shape = 's32[1]{0}', space=sflag, size = 0x4, scoped, tag = 'scoped memory for tpu_custom_call.1']
    #allocation8 [shape = 'u8[1536]{0}', space=vmem, size = 0x800, scoped, tag = 'input window, operand 2, single buffered']
    #allocation9 [shape = 'u8[24576]{0}', space=vmem, size = 0x6000, scoped, tag = 'output window, operand 0, single buffered']
    %8 = vsyncpa [#allocation4], 0
    %9 = vsyncpa [#allocation7], 0
    %10 = vsyncpa [#allocation5], 0
    // Predicated region
    $region2: #{tpu_custom_call.1} parent=1 // pred_check
      _
    $region3: #{tpu_custom_call.1} parent=1 // pred_check_branch
      %12 = sbr.rel (0) target = $region5
    $region4: #{tpu_custom_call.1} parent=1 // pred_region
      %14 = vsyncadd [#allocation4], 0
      %s15 = sshll.u32 %s0, 4
      %s16 = int_to_ptr.hbm [resolvable:$true] %s15
      %s17 = sshll.u32 [#allocation3], 4
      %s18 = int_to_ptr.vmem [resolvable:$true] %s17
      %23 = dma.hbm_to_vmem [thread:$0]  %s16, 256, %s18, [#allocation4], 64, 64, 4
    $region5: #{tpu_custom_call.1} parent=1 // pred_fallthru
      _
    // Predicated region
    $region6: #{tpu_custom_call.1} parent=1 // pred_check
      _
    $region7: #{tpu_custom_call.1} parent=1 // pred_check_branch
      %25 = sbr.rel (0) target = $region9
    $region8: #{tpu_custom_call.1} parent=1 // pred_region
      %27 = vsyncadd [#allocation7], 0
      %s28 = sshll.u32 %s1, 4
      %s29 = int_to_ptr.hbm [resolvable:$true] %s28
      %s30 = sshll.u32 [#allocation6], 4
      %s31 = int_to_ptr.vmem [resolvable:$true] %s30
      %36 = dma.hbm_to_vmem [thread:$0]  %s29, 3072, %s31, [#allocation7], 192, 192, 12
    $region9: #{tpu_custom_call.1} parent=1 // pred_fallthru
      _
    // Predicated region
    $region10: #{tpu_custom_call.1} parent=1 // pred_check
      _
    $region11: #{tpu_custom_call.1} parent=1 // pred_check_branch
      %38 = sbr.rel (0) target = $region13
    $region12: #{tpu_custom_call.1} parent=1 // pred_region
      %40 = vsyncadd [#allocation7], 0
      %s42 = sshll.u32 %s2, 4
      %s43 = int_to_ptr.hbm [resolvable:$true] %s42
      %s44 = sshll.u32 [#allocation8], 4
      %s45 = int_to_ptr.vmem [resolvable:$true] %s44
      %47 = dma.hbm_to_vmem [thread:$0]  %s43, 48, %s45, [#allocation7]
    $region13: #{tpu_custom_call.1} parent=1 // pred_fallthru
      _
    // Predicated region
    $region14: #{tpu_custom_call.1} parent=1 // pred_check
      _
    $region15: #{tpu_custom_call.1} parent=1 // pred_check_branch
      %49 = sbr.rel (0) target = $region17
    $region16: #{tpu_custom_call.1} parent=1 // pred_region
      %51 = dma.done [#allocation4], 256
    $region17: #{tpu_custom_call.1} parent=1 // pred_fallthru
      _
    // Predicated region
    $region18: #{tpu_custom_call.1} parent=1 // pred_check
      _
    $region19: #{tpu_custom_call.1} parent=1 // pred_check_branch
      %53 = sbr.rel (0) target = $region21
    $region20: #{tpu_custom_call.1} parent=1 // pred_region
      %55 = dma.done [#allocation7], 3072
    $region21: #{tpu_custom_call.1} parent=1 // pred_fallthru
      _
    // Predicated region
    $region22: #{tpu_custom_call.1} parent=1 // pred_check
      _
    $region23: #{tpu_custom_call.1} parent=1 // pred_check_branch
      %57 = sbr.rel (0) target = $region25
    $region24: #{tpu_custom_call.1} parent=1 // pred_region
      %59 = dma.done [#allocation7], 48
    $region25: #{tpu_custom_call.1} parent=1 // pred_fallthru
      _
    %p60 = scmp.eq.s32.totalorder 0, 0
    // Predicated region
    $region26: #{tpu_custom_call.1} parent=1 // pred_check
      %p61 = pneg %p60
    $region27: #{tpu_custom_call.1} parent=1 // pred_check_branch
      %63 = sbr.rel (%p61) target = $region29
    $region28: #{tpu_custom_call.1} parent=1 // pred_region
      %64 = vst [vmem:[#allocation2] sm:$0xff] 0.0
      %65 = vst [vmem:[#allocation2 + $0x8] sm:$0xff] 0.0
      %66 = vst [vmem:[#allocation2 + $0x10] sm:$0xff] 0.0
      %67 = vst [vmem:[#allocation2 + $0x18] sm:$0xff] 0.0
      %68 = vst [vmem:[#allocation2 + $0x20] sm:$0xff] 0.0
      %69 = vst [vmem:[#allocation2 + $0x28] sm:$0xff] 0.0
      %70 = vst [vmem:[#allocation2 + $0x30] sm:$0xff] 0.0
      %71 = vst [vmem:[#allocation2 + $0x38] sm:$0xff] 0.0
      %72 = vst [vmem:[#allocation2 + $0x40] sm:$0xff] 0.0
      %73 = vst [vmem:[#allocation2 + $0x48] sm:$0xff] 0.0
      %74 = vst [vmem:[#allocation2 + $0x50] sm:$0xff] 0.0
      %75 = vst [vmem:[#allocation2 + $0x58] sm:$0xff] 0.0
    $region29: #{tpu_custom_call.1} parent=1 // pred_fallthru
      _
    %v76 = vld [vmem:[#allocation2] sm:$0xff]
    %v77 = vld [vmem:[#allocation2 + $0x8] sm:$0xff]
    %v78 = vld [vmem:[#allocation2 + $0x10] sm:$0xff]
    %v79 = vld [vmem:[#allocation2 + $0x18] sm:$0xff]
    %v80 = vld [vmem:[#allocation2 + $0x20] sm:$0xff]
    %v81 = vld [vmem:[#allocation2 + $0x28] sm:$0xff]
    %v82 = vld [vmem:[#allocation2 + $0x30] sm:$0xff]
    %v83 = vld [vmem:[#allocation2 + $0x38] sm:$0xff]
    %v84 = vld [vmem:[#allocation2 + $0x40] sm:$0xff]
    %v85 = vld [vmem:[#allocation2 + $0x48] sm:$0xff]
    %v86 = vld [vmem:[#allocation2 + $0x50] sm:$0xff]
    %v87 = vld [vmem:[#allocation2 + $0x58] sm:$0xff]
    %v88 = vld [vmem:[#allocation3] sm:$0xf]
    %v89 = vld [vmem:[#allocation3 + $0x4] sm:$0xf]
    %v90 = vld [vmem:[#allocation3 + $0x8] sm:$0xf]
    %v91 = vld [vmem:[#allocation3 + $0xc] sm:$0xf]
    %v92 = vld [vmem:[#allocation6] sm:$0xff]
    %v93 = vld [vmem:[#allocation6 + $0x8] sm:$0xf]
    %v94 = vld [vmem:[#allocation6 + $0xc] sm:$0xff]
    %v95 = vld [vmem:[#allocation6 + $0x14] sm:$0xf]
    %v96 = vld [vmem:[#allocation6 + $0x18] sm:$0xff]
    %v97 = vld [vmem:[#allocation6 + $0x20] sm:$0xf]
    %v98 = vld [vmem:[#allocation6 + $0x24] sm:$0xff]
    %v99 = vld [vmem:[#allocation6 + $0x2c] sm:$0xf]
    %v100 = vld [vmem:[#allocation6 + $0x30] sm:$0xff]
    %v101 = vld [vmem:[#allocation6 + $0x38] sm:$0xf]
    %v102 = vld [vmem:[#allocation6 + $0x3c] sm:$0xff]
    %v103 = vld [vmem:[#allocation6 + $0x44] sm:$0xf]
    %v104 = vld [vmem:[#allocation6 + $0x48] sm:$0xff]
    %v105 = vld [vmem:[#allocation6 + $0x50] sm:$0xf]
    %v106 = vld [vmem:[#allocation6 + $0x54] sm:$0xff]
    %v107 = vld [vmem:[#allocation6 + $0x5c] sm:$0xf]
    %v108 = vld [vmem:[#allocation6 + $0x60] sm:$0xff]
    %v109 = vld [vmem:[#allocation6 + $0x68] sm:$0xf]
    %v110 = vld [vmem:[#allocation6 + $0x6c] sm:$0xff]
    %v111 = vld [vmem:[#allocation6 + $0x74] sm:$0xf]
    %v112 = vld [vmem:[#allocation6 + $0x78] sm:$0xff]
    %v113 = vld [vmem:[#allocation6 + $0x80] sm:$0xf]
    %v114 = vld [vmem:[#allocation6 + $0x84] sm:$0xff]
    %v115 = vld [vmem:[#allocation6 + $0x8c] sm:$0xf]
    %v116 = vld [vmem:[#allocation6 + $0x90] sm:$0xff]
    %v117 = vld [vmem:[#allocation6 + $0x98] sm:$0xf]
    %v118 = vld [vmem:[#allocation6 + $0x9c] sm:$0xff]
    %v119 = vld [vmem:[#allocation6 + $0xa4] sm:$0xf]
    %v120 = vld [vmem:[#allocation6 + $0xa8] sm:$0xff]
    %v121 = vld [vmem:[#allocation6 + $0xb0] sm:$0xf]
    %v122 = vld [vmem:[#allocation6 + $0xb4] sm:$0xff]
    %v123 = vld [vmem:[#allocation6 + $0xbc] sm:$0xf]
    %v128 = vunpack.c.l.b16 %v88
    %v129 = vunpack.c.l.b16 %v89
    %v130 = vunpack.c.l.b16 %v90
    %v131 = vunpack.c.l.b16 %v91
    %v132 = vpack.c.b16 %v129, %v128
    %v133 = vpack.c.b16 %v131, %v130
    %v168 = vunpack.c.l.b16 %v92
    %v169 = vunpack.c.h.b16 %v92
    %v170 = vunpack.c.l.b16 %v93
    %v171 = vunpack.c.l.b16 %v94
    %v172 = vunpack.c.h.b16 %v94
    %v173 = vunpack.c.l.b16 %v95
    %v174 = vunpack.c.l.b16 %v96
    %v175 = vunpack.c.h.b16 %v96
    %v176 = vunpack.c.l.b16 %v97
    %v177 = vunpack.c.l.b16 %v98
    %v178 = vunpack.c.h.b16 %v98
    %v179 = vunpack.c.l.b16 %v99
    %v180 = vunpack.c.l.b16 %v100
    %v181 = vunpack.c.h.b16 %v100
    %v182 = vunpack.c.l.b16 %v101
    %v183 = vunpack.c.l.b16 %v102
    %v184 = vunpack.c.h.b16 %v102
    %v185 = vunpack.c.l.b16 %v103
    %v186 = vunpack.c.l.b16 %v104
    %v187 = vunpack.c.h.b16 %v104
    %v188 = vunpack.c.l.b16 %v105
    %v189 = vunpack.c.l.b16 %v106
    %v190 = vunpack.c.h.b16 %v106
    %v191 = vunpack.c.l.b16 %v107
    %v192 = vunpack.c.l.b16 %v108
    %v193 = vunpack.c.h.b16 %v108
    %v194 = vunpack.c.l.b16 %v109
    %v195 = vunpack.c.l.b16 %v110
    %v196 = vunpack.c.h.b16 %v110
    %v197 = vunpack.c.l.b16 %v111
    %v198 = vunpack.c.l.b16 %v112
    %v199 = vunpack.c.h.b16 %v112
    %v200 = vunpack.c.l.b16 %v113
    %v201 = vunpack.c.l.b16 %v114
    %v202 = vunpack.c.h.b16 %v114
    %v203 = vunpack.c.l.b16 %v115
    %v204 = vunpack.c.l.b16 %v116
    %v205 = vunpack.c.h.b16 %v116
    %v206 = vunpack.c.l.b16 %v117
    %v207 = vunpack.c.l.b16 %v118
    %v208 = vunpack.c.h.b16 %v118
    %v209 = vunpack.c.l.b16 %v119
    %v210 = vunpack.c.l.b16 %v120
    %v211 = vunpack.c.h.b16 %v120
    %v212 = vunpack.c.l.b16 %v121
    %v213 = vunpack.c.l.b16 %v122
    %v214 = vunpack.c.h.b16 %v122
    %v215 = vunpack.c.l.b16 %v123
    %v216 = vpack.c.b16 %v171, %v168
    %v217 = vpack.c.b16 %v172, %v169
    %v218 = vpack.c.b16 %v173, %v170
    %v219 = vpack.c.b16 %v177, %v174
    %v220 = vpack.c.b16 %v178, %v175
    %v221 = vpack.c.b16 %v179, %v176
    %v222 = vpack.c.b16 %v183, %v180
    %v223 = vpack.c.b16 %v184, %v181
    %v224 = vpack.c.b16 %v185, %v182
    %v225 = vpack.c.b16 %v189, %v186
    %v226 = vpack.c.b16 %v190, %v187
    %v227 = vpack.c.b16 %v191, %v188
    %v228 = vpack.c.b16 %v195, %v192
    %v229 = vpack.c.b16 %v196, %v193
    %v230 = vpack.c.b16 %v197, %v194
    %v231 = vpack.c.b16 %v201, %v198
    %v232 = vpack.c.b16 %v202, %v199
    %v233 = vpack.c.b16 %v203, %v200
    %v234 = vpack.c.b16 %v207, %v204
    %v235 = vpack.c.b16 %v208, %v205
    %v236 = vpack.c.b16 %v209, %v206
    %v237 = vpack.c.b16 %v213, %v210
    %v238 = vpack.c.b16 %v214, %v211
    %v239 = vpack.c.b16 %v215, %v212
    %264 = vmatpush.bf16.msra.mxu0 %v237
    %265 = vmatpush.bf16.msra.mxu0 %v234
    %266 = vmatpush.bf16.msra.mxu0 %v231
    %267 = vmatpush.bf16.msra.mxu0 %v228
    %268 = vmatpush.bf16.msra.mxu0 %v225
    %269 = vmatpush.bf16.msra.mxu0 %v222
    %270 = vmatpush.bf16.msra.mxu0 %v219
    %271 = vmatpush.bf16.msra.mxu0 %v216
    %272 = vmatmul.bf16.gmra.mxu0 %v132
    %v273 = vpop.f32.mrf.mxu0
    %v274 = vadd.f32 0.0, %v273
    %v275 = vpop.f32.mrf.mxu0
    %v276 = vadd.f32 0.0, %v275
    %277 = vmatmul.bf16.gmra.mxu0 %v133
    %v278 = vpop.f32.mrf.mxu0
    %v279 = vadd.f32 0.0, %v278
    %v280 = vpop.f32.mrf.mxu0
    %v281 = vadd.f32 0.0, %v280
    %282 = vdwg.mxu0
    %283 = vmatpush.bf16.msra.mxu0 %v238
    %284 = vmatpush.bf16.msra.mxu0 %v235
    %285 = vmatpush.bf16.msra.mxu0 %v232
    %286 = vmatpush.bf16.msra.mxu0 %v229
    %287 = vmatpush.bf16.msra.mxu0 %v226
    %288 = vmatpush.bf16.msra.mxu0 %v223
    %289 = vmatpush.bf16.msra.mxu0 %v220
    %290 = vmatpush.bf16.msra.mxu0 %v217
    %291 = vmatmul.bf16.gmra.mxu0 %v132
    %v292 = vpop.f32.mrf.mxu0
    %v293 = vadd.f32 0.0, %v292
    %v294 = vpop.f32.mrf.mxu0
    %v295 = vadd.f32 0.0, %v294
    %296 = vmatmul.bf16.gmra.mxu0 %v133
    %v297 = vpop.f32.mrf.mxu0
    %v298 = vadd.f32 0.0, %v297
    %v299 = vpop.f32.mrf.mxu0
    %v300 = vadd.f32 0.0, %v299
    %301 = vdwg.mxu0
    %302 = vmatpush.bf16.msra.mxu0 %v239
    %303 = vmatpush.bf16.msra.mxu0 %v236
    %304 = vmatpush.bf16.msra.mxu0 %v233
    %305 = vmatpush.bf16.msra.mxu0 %v230
    %306 = vmatpush.bf16.msra.mxu0 %v227
    %307 = vmatpush.bf16.msra.mxu0 %v224
    %308 = vmatpush.bf16.msra.mxu0 %v221
    %309 = vmatpush.bf16.msra.mxu0 %v218
    %310 = vmatmul.bf16.gmra.mxu0 %v132
    %v311 = vpop.f32.mrf.mxu0
    %v312 = vadd.f32 0.0, %v311
    %v313 = vpop.f32.mrf.mxu0
    %v314 = vadd.f32 0.0, %v313
    %315 = vmatmul.bf16.gmra.mxu0 %v133
    %v316 = vpop.f32.mrf.mxu0
    %v317 = vadd.f32 0.0, %v316
    %v318 = vpop.f32.mrf.mxu0
    %v319 = vadd.f32 0.0, %v318
    %320 = vdwg.mxu0
    %v321 = vadd.f32 %v76, %v274
    %v322 = vadd.f32 %v77, %v293
    %v323 = vadd.f32 %v78, %v312
    %v324 = vadd.f32 %v79, %v276
    %v325 = vadd.f32 %v80, %v295
    %v326 = vadd.f32 %v81, %v314
    %v327 = vadd.f32 %v82, %v279
    %v328 = vadd.f32 %v83, %v298
    %v329 = vadd.f32 %v84, %v317
    %v330 = vadd.f32 %v85, %v281
    %v331 = vadd.f32 %v86, %v300
    %v332 = vadd.f32 %v87, %v319
    %333 = vst [vmem:[#allocation2] sm:$0xff] %v321
    %334 = vst [vmem:[#allocation2 + $0x8] sm:$0xff] %v322
    %335 = vst [vmem:[#allocation2 + $0x10] sm:$0xff] %v323
    %336 = vst [vmem:[#allocation2 + $0x18] sm:$0xff] %v324
    %337 = vst [vmem:[#allocation2 + $0x20] sm:$0xff] %v325
    %338 = vst [vmem:[#allocation2 + $0x28] sm:$0xff] %v326
    %339 = vst [vmem:[#allocation2 + $0x30] sm:$0xff] %v327
    %340 = vst [vmem:[#allocation2 + $0x38] sm:$0xff] %v328
    %341 = vst [vmem:[#allocation2 + $0x40] sm:$0xff] %v329
    %342 = vst [vmem:[#allocation2 + $0x48] sm:$0xff] %v330
    %343 = vst [vmem:[#allocation2 + $0x50] sm:$0xff] %v331
    %344 = vst [vmem:[#allocation2 + $0x58] sm:$0xff] %v332
    // Predicated region
    $region30: #{tpu_custom_call.1} parent=1 // pred_check
      %p345 = pneg %p60
    $region31: #{tpu_custom_call.1} parent=1 // pred_check_branch
      %347 = sbr.rel (%p345) target = $region33
    $region32: #{tpu_custom_call.1} parent=1 // pred_region
      %v348 = vld [vmem:[#allocation2] sm:$0xff]
      %v349 = vld [vmem:[#allocation2 + $0x8] sm:$0xff]
      %v350 = vld [vmem:[#allocation2 + $0x10] sm:$0xff]
      %v351 = vld [vmem:[#allocation2 + $0x18] sm:$0xff]
      %v352 = vld [vmem:[#allocation2 + $0x20] sm:$0xff]
      %v353 = vld [vmem:[#allocation2 + $0x28] sm:$0xff]
      %v354 = vld [vmem:[#allocation2 + $0x30] sm:$0xff]
      %v355 = vld [vmem:[#allocation2 + $0x38] sm:$0xff]
      %v356 = vld [vmem:[#allocation2 + $0x40] sm:$0xff]
      %v357 = vld [vmem:[#allocation2 + $0x48] sm:$0xff]
      %v358 = vld [vmem:[#allocation2 + $0x50] sm:$0xff]
      %v359 = vld [vmem:[#allocation2 + $0x58] sm:$0xff]
      %v360 = vld [vmem:[#allocation8] sm:$0x7]
      %v362 = vperm.slane %v360, 0
      %v363 = vperm.slane %v360, 1
      %v364 = vperm.slane %v360, 2
      %v368 = vadd.f32 %v348, %v362
      %v369 = vadd.f32 %v349, %v363
      %v370 = vadd.f32 %v350, %v364
      %v371 = vadd.f32 %v351, %v362
      %v372 = vadd.f32 %v352, %v363
      %v373 = vadd.f32 %v353, %v364
      %v374 = vadd.f32 %v354, %v362
      %v375 = vadd.f32 %v355, %v363
      %v376 = vadd.f32 %v356, %v364
      %v377 = vadd.f32 %v357, %v362
      %v378 = vadd.f32 %v358, %v363
      %v379 = vadd.f32 %v359, %v364
      %v380 = vpack.c.bf16 %v369, %v368
      %v381 = vpack.c.bf16 %v370, %v370
      %v382 = vpack.c.bf16 %v372, %v371
      %v383 = vpack.c.bf16 %v373, %v373
      %v384 = vpack.c.bf16 %v375, %v374
      %v385 = vpack.c.bf16 %v376, %v376
      %v386 = vpack.c.bf16 %v378, %v377
      %v387 = vpack.c.bf16 %v379, %v379
      %388 = vst [vmem:[#allocation9] sm:$0xff] %v380
      %389 = vst [vmem:[#allocation9 + $0x8] sm:$0xf] %v381
      %390 = vst [vmem:[#allocation9 + $0xc] sm:$0xff] %v382
      %391 = vst [vmem:[#allocation9 + $0x14] sm:$0xf] %v383
      %392 = vst [vmem:[#allocation9 + $0x18] sm:$0xff] %v384
      %393 = vst [vmem:[#allocation9 + $0x20] sm:$0xf] %v385
      %394 = vst [vmem:[#allocation9 + $0x24] sm:$0xff] %v386
      %395 = vst [vmem:[#allocation9 + $0x2c] sm:$0xf] %v387
    $region33: #{tpu_custom_call.1} parent=1 // pred_fallthru
      _
    // Predicated region
    $region34: #{tpu_custom_call.1} parent=1 // pred_check
      _
    $region35: #{tpu_custom_call.1} parent=1 // pred_check_branch
      %397 = sbr.rel (0) target = $region37
    $region36: #{tpu_custom_call.1} parent=1 // pred_region
      %399 = vsyncadd [#allocation5], 0
      %s400 = sshll.u32 [#allocation9], 4
      %s401 = int_to_ptr.vmem [resolvable:$true] %s400
      %s402 = sshll.u32 %s3, 4
      %s403 = int_to_ptr.hbm [resolvable:$true] %s402
      %408 = dma.vmem_to_hbm [thread:$0]  %s401, 768, %s403, [#allocation5], 192, 192, 12
    $region37: #{tpu_custom_call.1} parent=1 // pred_fallthru
      _
    // Predicated region
    $region38: #{tpu_custom_call.1} parent=1 // pred_check
      _
    $region39: #{tpu_custom_call.1} parent=1 // pred_check_branch
      %410 = sbr.rel (0) target = $region41
    $region40: #{tpu_custom_call.1} parent=1 // pred_region
      %412 = dma.done [#allocation5], 768
    $region41: #{tpu_custom_call.1} parent=1 // pred_fallthru
      _
    %413 = vsyncpa [#allocation4], 1
    %414 = vsyncpa [#allocation7], 1
    %415 = vsyncpa [#allocation5], 1

</llo_original>
